<compile_context>
chip_gen: v7x
topology: tpu7x:2x2x1
jax: 0.10.0
libtpu: 0.0.40
codegen_flags: <defaults>
</compile_context>

<pallas_src>
import jax
import jax.numpy as jnp
import numpy as np
from jax.experimental import pallas as pl
from jax.experimental.pallas import tpu as pltpu


def _conv1x1_pad_add_kernel(wb_ref, x_ref, other_ref, o_ref):
    # wb_ref    : (Cout, Cin+1)      [:, :Cin] = 1x1 conv weight, [:, Cin] = bias
    # x_ref     : (1, Cin,  Pblk)    zero-padded, spatially-flattened input slab
    # other_ref : (1, Cout, Pblk)
    # o_ref     : (1, Cout, Pblk)
    x = x_ref[0]                        # (Cin, Pblk)   lane-dense
    wb = wb_ref[...]                    # (Cout, Cin+1)
    cin = x.shape[0]

    # bias (lane-broadcast) + other, then Cin unrolled VPU FMAs.
    y = wb[:, cin:cin + 1] + other_ref[0]          # (Cout, Pblk)
    for i in range(cin):                           # static unroll (Cin == 2)
        y = y + wb[:, i:i + 1] * x[i:i + 1, :]

    o_ref[0] = y                        # single natural-layout store


def _default_spatial_splits():
    # 2 TensorCores per chip on v7x -> 2 parallel spatial blocks; otherwise the
    # grid is a serial loop, so a single resident block is strictly better.
    try:
        kind = jax.devices()[0].device_kind.lower()
    except Exception:
        return 1
    return 2 if "v7" in kind else 1


def conv1x1_pad_add(x_nchw, weight_oi, bias, other_nchw, *, spatial_splits=None):
    """x_nchw: (N, Cin, H, W); weight_oi: (Cout, Cin); bias: (Cout,);
    other_nchw: (N, Cout, H+2, W+2). Returns (N, Cout, H+2, W+2) float32."""
    if spatial_splits is None:
        spatial_splits = _default_spatial_splits()

    N, Cin, H, W = x_nchw.shape
    Cout = weight_oi.shape[0]
    Hp, Wp = H + 2, W + 2
    P = Hp * Wp

    # Block width: multiple of 128 lanes; last block is ragged (Pallas clips the
    # HBM <-> VMEM copies to the valid region, garbage lanes are never observable
    # because out_shape ends at exactly P).
    per_split = (P + spatial_splits - 1) // spatial_splits
    Pblk = max(128, ((per_split + 127) // 128) * 128)
    n_sblocks = (P + Pblk - 1) // Pblk

    # Single pad pass: spatial zero-pad, then metadata-only flatten of (Hp, Wp)
    # onto the lane axis.
    xf = jnp.pad(x_nchw.astype(jnp.float32),
                 ((0, 0), (0, 0), (1, 1), (1, 1))).reshape(N, Cin, P)
    of = other_nchw.astype(jnp.float32).reshape(N, Cout, P)

    # Fuse weight + bias into one tiny VMEM block: (Cout, Cin+1).
    wb = jnp.concatenate(
        [weight_oi.astype(jnp.float32),
         bias.astype(jnp.float32).reshape(Cout, 1)], axis=1)

    out_flat = pl.pallas_call(
        _conv1x1_pad_add_kernel,
        out_shape=jax.ShapeDtypeStruct((N, Cout, P), jnp.float32),
        grid_spec=pltpu.PrefetchScalarGridSpec(
            num_scalar_prefetch=0,
            grid=(N, n_sblocks),
            in_specs=[
                pl.BlockSpec((Cout, Cin + 1), lambda n, s: (0, 0)),
                pl.BlockSpec((1, Cin, Pblk), lambda n, s: (n, 0, s)),
                pl.BlockSpec((1, Cout, Pblk), lambda n, s: (n, 0, s)),
            ],
            out_specs=pl.BlockSpec((1, Cout, Pblk), lambda n, s: (n, 0, s)),
        ),
        compiler_params=pltpu.CompilerParams(
            dimension_semantics=("parallel", "parallel"),
        ),
    )(wb, xf, of)

    # Metadata-only reshape (no slice: out_shape is exactly P).
    return out_flat.reshape(N, Cout, Hp, Wp)


def _reference(x_nchw, weight_oi, bias, other_nchw):
    """Pure-JAX reference: conv2d(1x1, pad=1) + bias + other."""
    Cout, Cin = weight_oi.shape
    w4 = weight_oi.reshape(Cout, Cin, 1, 1)
    y = jax.lax.conv_general_dilated(
        x_nchw, w4, window_strides=(1, 1), padding=((1, 1), (1, 1)),
        dimension_numbers=("NCHW", "OIHW", "NCHW"))
    return y + bias[None, :, None, None] + other_nchw


if __name__ == "__main__":
    # Shapes from the module spec: x1 = randn(1, 2, 64, 64), Conv2d(2 -> 6, k=1, pad=1)
    N, Cin, H, W = 1, 2, 64, 64
    Cout = 6
    Hp, Wp = H + 2, W + 2

    key = jax.random.PRNGKey(0)
    kx, kw, kb, ko = jax.random.split(key, 4)

    x1 = jax.random.normal(kx, (N, Cin, H, W), dtype=jnp.float32)
    # deterministic parameter init (torch-style scale 1/sqrt(fan_in))
    bound = 1.0 / np.sqrt(Cin)
    weight = jax.random.uniform(kw, (Cout, Cin), jnp.float32, -bound, bound)
    bias = jax.random.uniform(kb, (Cout,), jnp.float32, -bound, bound)
    # `other` is torch.randn(v1.shape) inside the module; supplied deterministically here.
    other = jax.random.normal(ko, (N, Cout, Hp, Wp), dtype=jnp.float32)

    out = conv1x1_pad_add(x1, weight, bias, other)
    out = jax.block_until_ready(out)

    ref = _reference(x1, weight, bias, other)
    np.testing.assert_allclose(np.asarray(out), np.asarray(ref), rtol=1e-5, atol=1e-5)

    print("KERNEL_OK")
</pallas_src>

<mosaic_0001>
module attributes {stable_mosaic.version = 11 : i64} {
  func.func @_conv1x1_pad_add_kernel(%arg0: i32, %arg1: i32, %arg2: memref<6x3xf32, #tpu.memory_space<vmem>>, %arg3: memref<1x2x4480xf32, #tpu.memory_space<vmem>>, %arg4: memref<1x6x4480xf32, #tpu.memory_space<vmem>>, %arg5: memref<1x6x4480xf32, #tpu.memory_space<vmem>>) attributes {dimension_semantics = [#tpu.dimension_semantics<parallel>, #tpu.dimension_semantics<parallel>], iteration_bounds = array<i64: 1, 1>, scalar_prefetch = 0 : i64, scratch_operands = 0 : i64, tpu.core_type = #tpu.core_type<tc>, window_params = [{pipeline_mode = #tpu.pipeline_mode<synchronous>, transform_indices = @transform_0, window_bounds = array<i64: 6, 3>}, {transform_indices = @transform_1, window_bounds = array<i64: 1, 2, 4480>}, {transform_indices = @transform_2, window_bounds = array<i64: 1, 6, 4480>}, {transform_indices = @transform_3, window_bounds = array<i64: 1, 6, 4480>}]} {
    %c0 = arith.constant 0 : index
    %c0_0 = arith.constant 0 : index
    %c0_1 = arith.constant 0 : index
    %0 = vector.load %arg3[%c0, %c0_0, %c0_1] : memref<1x2x4480xf32, #tpu.memory_space<vmem>>, vector<1x2x4480xf32>
    %1 = vector.shape_cast %0 : vector<1x2x4480xf32> to vector<2x4480xf32>
    %c0_2 = arith.constant 0 : index
    %c0_3 = arith.constant 0 : index
    %2 = vector.load %arg2[%c0_2, %c0_3] : memref<6x3xf32, #tpu.memory_space<vmem>>, vector<6x3xf32>
    %3 = vector.extract_strided_slice %2 {offsets = [0, 2], sizes = [6, 1], strides = [1, 1]} : vector<6x3xf32> to vector<6x1xf32>
    %c0_4 = arith.constant 0 : index
    %c0_5 = arith.constant 0 : index
    %c0_6 = arith.constant 0 : index
    %4 = vector.load %arg4[%c0_4, %c0_5, %c0_6] : memref<1x6x4480xf32, #tpu.memory_space<vmem>>, vector<1x6x4480xf32>
    %5 = vector.shape_cast %4 : vector<1x6x4480xf32> to vector<6x4480xf32>
    %6 = vector.broadcast %3 : vector<6x1xf32> to vector<6x4480xf32>
    %7 = arith.addf %6, %5 : vector<6x4480xf32>
    %8 = vector.extract_strided_slice %2 {offsets = [0, 0], sizes = [6, 1], strides = [1, 1]} : vector<6x3xf32> to vector<6x1xf32>
    %9 = vector.extract_strided_slice %1 {offsets = [0, 0], sizes = [1, 4480], strides = [1, 1]} : vector<2x4480xf32> to vector<1x4480xf32>
    %10 = vector.broadcast %8 : vector<6x1xf32> to vector<6x4480xf32>
    %11 = vector.broadcast %9 : vector<1x4480xf32> to vector<6x4480xf32>
    %12 = arith.mulf %10, %11 : vector<6x4480xf32>
    %13 = arith.addf %7, %12 : vector<6x4480xf32>
    %14 = vector.extract_strided_slice %2 {offsets = [0, 1], sizes = [6, 1], strides = [1, 1]} : vector<6x3xf32> to vector<6x1xf32>
    %15 = vector.extract_strided_slice %1 {offsets = [1, 0], sizes = [1, 4480], strides = [1, 1]} : vector<2x4480xf32> to vector<1x4480xf32>
    %16 = vector.broadcast %14 : vector<6x1xf32> to vector<6x4480xf32>
    %17 = vector.broadcast %15 : vector<1x4480xf32> to vector<6x4480xf32>
    %18 = arith.mulf %16, %17 : vector<6x4480xf32>
    %19 = arith.addf %13, %18 : vector<6x4480xf32>
    %c0_7 = arith.constant 0 : index
    %c0_8 = arith.constant 0 : index
    %c0_9 = arith.constant 0 : index
    %20 = vector.load %arg5[%c0_7, %c0_8, %c0_9] : memref<1x6x4480xf32, #tpu.memory_space<vmem>>, vector<1x6x4480xf32>
    %21 = vector.shape_cast %20 : vector<1x6x4480xf32> to vector<6x4480xf32>
    %22 = vector.shape_cast %19 : vector<6x4480xf32> to vector<1x6x4480xf32>
    tpu.vector_store %arg5[%c0_7, %c0_8, %c0_9], %22 {strides = array<i32>} : memref<1x6x4480xf32, #tpu.memory_space<vmem>>, vector<1x6x4480xf32>,
    return
  }
  func.func @transform_0(%arg0: i32, %arg1: i32) -> (i32, i32) {
    %c0_i32 = arith.constant 0 : i32
    %c0_i32_0 = arith.constant 0 : i32
    %c0_i32_1 = arith.constant 0 : i32
    return %c0_i32, %c0_i32_0 : i32, i32
  }
  func.func @transform_1(%arg0: i32, %arg1: i32) -> (i32, i32, i32) {
    %c0_i32 = arith.constant 0 : i32
    %c0_i32_0 = arith.constant 0 : i32
    return %arg0, %c0_i32, %arg1 : i32, i32, i32
  }
  func.func @transform_2(%arg0: i32, %arg1: i32) -> (i32, i32, i32) {
    %c0_i32 = arith.constant 0 : i32
    %c0_i32_0 = arith.constant 0 : i32
    return %arg0, %c0_i32, %arg1 : i32, i32, i32
  }
  func.func @transform_3(%arg0: i32, %arg1: i32) -> (i32, i32, i32) {
    %c0_i32 = arith.constant 0 : i32
    %c0_i32_0 = arith.constant 0 : i32
    return %arg0, %c0_i32, %arg1 : i32, i32, i32
  }
}

</mosaic_0001>

<llo_original>
// kernel: tpu_custom_call.1
$region0: #{tpu_custom_call.1}
  #allocation0 [shape = 'u32[]', space=smem, size = 0x4, offset = 0x4, fixed_abs, tag = 'smem constant byte address 0x4 - core index']
  #allocation1 [shape = 'u32[144,128]{1,0:T(1,128)}', space=vmem, size = 0x12000, scoped, tag = 'internal scratch']
  %s0 = inlined_call_operand.vmem [shape: f32[6,3], index: 0, kind: input, shape index: {}]
  %s1 = inlined_call_operand.vmem [shape: f32[1,2,4356], index: 1, kind: input, shape index: {}]
  %s2 = inlined_call_operand.vmem [shape: f32[1,6,4356], index: 2, kind: input, shape index: {}]
  %s3 = inlined_call_operand.vmem [shape: f32[1,6,4356], index: 3, kind: output, shape index: {}]
  %s4 = sld [smem:[#allocation0]]
  $region22: #{tpu_custom_call.1} parent=0
    _
  %s6 = ssub.s32 1, %s4
  %s7 = scalar_select 0, %s6, %s4
  // Predicated region
  $region2: #{tpu_custom_call.1} parent=0 // pred_check
    _
  $region3: #{tpu_custom_call.1} parent=0 // pred_check_branch
    %9 = sbr.rel (0) target = $region5
  $region4: #{tpu_custom_call.1} parent=0 // pred_region
    _
  $region5: #{tpu_custom_call.1} parent=0 // pred_fallthru
    _
  // Predicated region
  $region6: #{tpu_custom_call.1} parent=0 // pred_check
    _
  $region7: #{tpu_custom_call.1} parent=0 // pred_check_branch
    %11 = sbr.rel (0) target = $region9
  $region8: #{tpu_custom_call.1} parent=0 // pred_region
    _
  $region9: #{tpu_custom_call.1} parent=0 // pred_fallthru
    _
  // Predicated region
  $region10: #{tpu_custom_call.1} parent=0 // pred_check
    _
  $region11: #{tpu_custom_call.1} parent=0 // pred_check_branch
    %13 = sbr.rel (0) target = $region13
  $region12: #{tpu_custom_call.1} parent=0 // pred_region
    _
  $region13: #{tpu_custom_call.1} parent=0 // pred_fallthru
    _
  %v14 = vld [vmem:[%s1] sm:$0xff]
  %v15 = vld [vmem:[%s1 + $0x8] sm:$0xff]
  %v16 = vld [vmem:[%s1 + $0x10] sm:$0xff]
  %v17 = vld [vmem:[%s1 + $0x18] sm:$0xff]
  %v18 = vld [vmem:[%s1 + $0x20] sm:$0xff]
  %v19 = vld [vmem:[%s1 + $0x28] sm:$0xff]
  %v20 = vld [vmem:[%s1 + $0x30] sm:$0xff]
  %v21 = vld [vmem:[%s1 + $0x38] sm:$0xff]
  %v22 = vld [vmem:[%s1 + $0x40] sm:$0x3f]
  %v23 = vld [vmem:[%s0] sm:$0x3f]
  %v24 = vld [vmem:[%s2] sm:$0x3f]
  %v25 = vld [vmem:[%s2 + $0x8] sm:$0x3f]
  %v26 = vld [vmem:[%s2 + $0x10] sm:$0x3f]
  %v27 = vld [vmem:[%s2 + $0x18] sm:$0x3f]
  %v28 = vld [vmem:[%s2 + $0x20] sm:$0x3f]
  %v29 = vld [vmem:[%s2 + $0x28] sm:$0x3f]
  %v30 = vld [vmem:[%s2 + $0x30] sm:$0x3f]
  %v31 = vld [vmem:[%s2 + $0x38] sm:$0x3f]
  %v32 = vld [vmem:[%s2 + $0x40] sm:$0x3f]
  %v33 = vld [vmem:[%s2 + $0x48] sm:$0x3f]
  %v34 = vld [vmem:[%s2 + $0x50] sm:$0x3f]
  %v35 = vld [vmem:[%s2 + $0x58] sm:$0x3f]
  %v36 = vld [vmem:[%s2 + $0x60] sm:$0x3f]
  %v37 = vld [vmem:[%s2 + $0x68] sm:$0x3f]
  %v38 = vld [vmem:[%s2 + $0x70] sm:$0x3f]
  %v39 = vld [vmem:[%s2 + $0x78] sm:$0x3f]
  %v40 = vld [vmem:[%s2 + $0x80] sm:$0x3f]
  %v41 = vld [vmem:[%s2 + $0x88] sm:$0x3f]
  %v42 = vld [vmem:[%s2 + $0x90] sm:$0x3f]
  %v43 = vld [vmem:[%s2 + $0x98] sm:$0x3f]
  %v44 = vld [vmem:[%s2 + $0xa0] sm:$0x3f]
  %v45 = vld [vmem:[%s2 + $0xa8] sm:$0x3f]
  %v46 = vld [vmem:[%s2 + $0xb0] sm:$0x3f]
  %v47 = vld [vmem:[%s2 + $0xb8] sm:$0x3f]
  %v48 = vld [vmem:[%s2 + $0xc0] sm:$0x3f]
  %v49 = vld [vmem:[%s2 + $0xc8] sm:$0x3f]
  %v50 = vld [vmem:[%s2 + $0xd0] sm:$0x3f]
  %v51 = vld [vmem:[%s2 + $0xd8] sm:$0x3f]
  %v52 = vld [vmem:[%s2 + $0xe0] sm:$0x3f]
  %v53 = vld [vmem:[%s2 + $0xe8] sm:$0x3f]
  %v54 = vld [vmem:[%s2 + $0xf0] sm:$0x3f]
  %v55 = vld [vmem:[%s2 + $0xf8] sm:$0x3f]
  %v56 = vld [vmem:[%s2 + $0x100] sm:$0x3f]
  %v57 = vld [vmem:[%s2 + $0x108] sm:$0x3f]
  %v58 = vld [vmem:[%s2 + $0x110] sm:$0x3f]
  %60 = vset.pattern.permute.xlu0 2
  %61 = vperm.xlu0 %60, %v23
  %v62 = vpop.permute.xlu0 %61
  %v64 = vadd.f32 %v62, %v24
  %v65 = vadd.f32 %v62, %v25
  %v66 = vadd.f32 %v62, %v26
  %v67 = vadd.f32 %v62, %v27
  %v68 = vadd.f32 %v62, %v28
  %v69 = vadd.f32 %v62, %v29
  %v70 = vadd.f32 %v62, %v30
  %v71 = vadd.f32 %v62, %v31
  %v72 = vadd.f32 %v62, %v32
  %v73 = vadd.f32 %v62, %v33
  %v74 = vadd.f32 %v62, %v34
  %v75 = vadd.f32 %v62, %v35
  %v76 = vadd.f32 %v62, %v36
  %v77 = vadd.f32 %v62, %v37
  %v78 = vadd.f32 %v62, %v38
  %v79 = vadd.f32 %v62, %v39
  %v80 = vadd.f32 %v62, %v40
  %v81 = vadd.f32 %v62, %v41
  %v82 = vadd.f32 %v62, %v42
  %v83 = vadd.f32 %v62, %v43
  %v84 = vadd.f32 %v62, %v44
  %v85 = vadd.f32 %v62, %v45
  %v86 = vadd.f32 %v62, %v46
  %v87 = vadd.f32 %v62, %v47
  %v88 = vadd.f32 %v62, %v48
  %v89 = vadd.f32 %v62, %v49
  %v90 = vadd.f32 %v62, %v50
  %v91 = vadd.f32 %v62, %v51
  %v92 = vadd.f32 %v62, %v52
  %v93 = vadd.f32 %v62, %v53
  %v94 = vadd.f32 %v62, %v54
  %v95 = vadd.f32 %v62, %v55
  %v96 = vadd.f32 %v62, %v56
  %v97 = vadd.f32 %v62, %v57
  %v98 = vadd.f32 %v62, %v58
  %99 = vset.pattern.permute.xlu0 0
  %100 = vperm.xlu0 %99, %v23
  %v101 = vpop.permute.xlu0 %100
  %v112 = vlaneseq
  %v113 = vshrl.u32 %v112, 7
  %v114 = vsub.s32 0, %v113
  %v115 = vrot.slane %v14, %v114
  %v116 = vlaneseq
  %v117 = vshrl.u32 %v116, 7
  %v118 = vsub.s32 2, %v117
  %v119 = vrot.slane %v14, %v118
  %v120 = vlaneseq
  %v121 = vshrl.u32 %v120, 7
  %v122 = vsub.s32 4, %v121
  %v123 = vrot.slane %v14, %v122
  %v124 = vlaneseq
  %v125 = vshrl.u32 %v124, 7
  %v126 = vsub.s32 6, %v125
  %v127 = vrot.slane %v14, %v126
  %v128 = vlaneseq
  %v129 = vshrl.u32 %v128, 7
  %v130 = vsub.s32 0, %v129
  %v131 = vrot.slane %v15, %v130
  %v132 = vlaneseq
  %v133 = vshrl.u32 %v132, 7
  %v134 = vsub.s32 2, %v133
  %v135 = vrot.slane %v15, %v134
  %v136 = vlaneseq
  %v137 = vshrl.u32 %v136, 7
  %v138 = vsub.s32 4, %v137
  %v139 = vrot.slane %v15, %v138
  %v140 = vlaneseq
  %v141 = vshrl.u32 %v140, 7
  %v142 = vsub.s32 6, %v141
  %v143 = vrot.slane %v15, %v142
  %v144 = vlaneseq
  %v145 = vshrl.u32 %v144, 7
  %v146 = vsub.s32 0, %v145
  %v147 = vrot.slane %v16, %v146
  %v148 = vlaneseq
  %v149 = vshrl.u32 %v148, 7
  %v150 = vsub.s32 2, %v149
  %v151 = vrot.slane %v16, %v150
  %v152 = vlaneseq
  %v153 = vshrl.u32 %v152, 7
  %v154 = vsub.s32 4, %v153
  %v155 = vrot.slane %v16, %v154
  %v156 = vlaneseq
  %v157 = vshrl.u32 %v156, 7
  %v158 = vsub.s32 6, %v157
  %v159 = vrot.slane %v16, %v158
  %v160 = vlaneseq
  %v161 = vshrl.u32 %v160, 7
  %v162 = vsub.s32 0, %v161
  %v163 = vrot.slane %v17, %v162
  %v164 = vlaneseq
  %v165 = vshrl.u32 %v164, 7
  %v166 = vsub.s32 2, %v165
  %v167 = vrot.slane %v17, %v166
  %v168 = vlaneseq
  %v169 = vshrl.u32 %v168, 7
  %v170 = vsub.s32 4, %v169
  %v171 = vrot.slane %v17, %v170
  %v172 = vlaneseq
  %v173 = vshrl.u32 %v172, 7
  %v174 = vsub.s32 6, %v173
  %v175 = vrot.slane %v17, %v174
  %v176 = vlaneseq
  %v177 = vshrl.u32 %v176, 7
  %v178 = vsub.s32 0, %v177
  %v179 = vrot.slane %v18, %v178
  %v180 = vlaneseq
  %v181 = vshrl.u32 %v180, 7
  %v182 = vsub.s32 2, %v181
  %v183 = vrot.slane %v18, %v182
  %v184 = vlaneseq
  %v185 = vshrl.u32 %v184, 7
  %v186 = vsub.s32 4, %v185
  %v187 = vrot.slane %v18, %v186
  %v188 = vlaneseq
  %v189 = vshrl.u32 %v188, 7
  %v190 = vsub.s32 6, %v189
  %v191 = vrot.slane %v18, %v190
  %v192 = vlaneseq
  %v193 = vshrl.u32 %v192, 7
  %v194 = vsub.s32 0, %v193
  %v195 = vrot.slane %v19, %v194
  %v196 = vlaneseq
  %v197 = vshrl.u32 %v196, 7
  %v198 = vsub.s32 2, %v197
  %v199 = vrot.slane %v19, %v198
  %v200 = vlaneseq
  %v201 = vshrl.u32 %v200, 7
  %v202 = vsub.s32 4, %v201
  %v203 = vrot.slane %v19, %v202
  %v204 = vlaneseq
  %v205 = vshrl.u32 %v204, 7
  %v206 = vsub.s32 6, %v205
  %v207 = vrot.slane %v19, %v206
  %v208 = vlaneseq
  %v209 = vshrl.u32 %v208, 7
  %v210 = vsub.s32 0, %v209
  %v211 = vrot.slane %v20, %v210
  %v212 = vlaneseq
  %v213 = vshrl.u32 %v212, 7
  %v214 = vsub.s32 2, %v213
  %v215 = vrot.slane %v20, %v214
  %v216 = vlaneseq
  %v217 = vshrl.u32 %v216, 7
  %v218 = vsub.s32 4, %v217
  %v219 = vrot.slane %v20, %v218
  %v220 = vlaneseq
  %v221 = vshrl.u32 %v220, 7
  %v222 = vsub.s32 6, %v221
  %v223 = vrot.slane %v20, %v222
  %v224 = vlaneseq
  %v225 = vshrl.u32 %v224, 7
  %v226 = vsub.s32 0, %v225
  %v227 = vrot.slane %v21, %v226
  %v228 = vlaneseq
  %v229 = vshrl.u32 %v228, 7
  %v230 = vsub.s32 2, %v229
  %v231 = vrot.slane %v21, %v230
  %v232 = vlaneseq
  %v233 = vshrl.u32 %v232, 7
  %v234 = vsub.s32 4, %v233
  %v235 = vrot.slane %v21, %v234
  %v236 = vlaneseq
  %v237 = vshrl.u32 %v236, 7
  %v238 = vsub.s32 6, %v237
  %v239 = vrot.slane %v21, %v238
  %v240 = vlaneseq
  %v241 = vshrl.u32 %v240, 7
  %v242 = vsub.s32 0, %v241
  %v243 = vrot.slane %v22, %v242
  %v244 = vlaneseq
  %v245 = vshrl.u32 %v244, 7
  %v246 = vsub.s32 2, %v245
  %v247 = vrot.slane %v22, %v246
  %v248 = vlaneseq
  %v249 = vshrl.u32 %v248, 7
  %v250 = vsub.s32 4, %v249
  %v251 = vrot.slane %v22, %v250
  %v287 = vlaneseq
  %v288 = vshrl.u32 %v287, 7
  %v289 = vsub.s32 0, %v288
  %v290 = vrot.slane %v115, %v289
  %v291 = vlaneseq
  %v292 = vshrl.u32 %v291, 7
  %v293 = vsub.s32 0, %v292
  %v294 = vrot.slane %v119, %v293
  %v295 = vlaneseq
  %v296 = vshrl.u32 %v295, 7
  %v297 = vsub.s32 0, %v296
  %v298 = vrot.slane %v123, %v297
  %v299 = vlaneseq
  %v300 = vshrl.u32 %v299, 7
  %v301 = vsub.s32 0, %v300
  %v302 = vrot.slane %v127, %v301
  %v303 = vlaneseq
  %v304 = vshrl.u32 %v303, 7
  %v305 = vsub.s32 0, %v304
  %v306 = vrot.slane %v131, %v305
  %v307 = vlaneseq
  %v308 = vshrl.u32 %v307, 7
  %v309 = vsub.s32 0, %v308
  %v310 = vrot.slane %v135, %v309
  %v311 = vlaneseq
  %v312 = vshrl.u32 %v311, 7
  %v313 = vsub.s32 0, %v312
  %v314 = vrot.slane %v139, %v313
  %v315 = vlaneseq
  %v316 = vshrl.u32 %v315, 7
  %v317 = vsub.s32 0, %v316
  %v318 = vrot.slane %v143, %v317
  %v319 = vlaneseq
  %v320 = vshrl.u32 %v319, 7
  %v321 = vsub.s32 0, %v320
  %v322 = vrot.slane %v147, %v321
  %v323 = vlaneseq
  %v324 = vshrl.u32 %v323, 7
  %v325 = vsub.s32 0, %v324
  %v326 = vrot.slane %v151, %v325
  %v327 = vlaneseq
  %v328 = vshrl.u32 %v327, 7
  %v329 = vsub.s32 0, %v328
  %v330 = vrot.slane %v155, %v329
  %v331 = vlaneseq
  %v332 = vshrl.u32 %v331, 7
  %v333 = vsub.s32 0, %v332
  %v334 = vrot.slane %v159, %v333
  %v335 = vlaneseq
  %v336 = vshrl.u32 %v335, 7
  %v337 = vsub.s32 0, %v336
  %v338 = vrot.slane %v163, %v337
  %v339 = vlaneseq
  %v340 = vshrl.u32 %v339, 7
  %v341 = vsub.s32 0, %v340
  %v342 = vrot.slane %v167, %v341
  %v343 = vlaneseq
  %v344 = vshrl.u32 %v343, 7
  %v345 = vsub.s32 0, %v344
  %v346 = vrot.slane %v171, %v345
  %v347 = vlaneseq
  %v348 = vshrl.u32 %v347, 7
  %v349 = vsub.s32 0, %v348
  %v350 = vrot.slane %v175, %v349
  %v351 = vlaneseq
  %v352 = vshrl.u32 %v351, 7
  %v353 = vsub.s32 0, %v352
  %v354 = vrot.slane %v179, %v353
  %v355 = vlaneseq
  %v356 = vshrl.u32 %v355, 7
  %v357 = vsub.s32 0, %v356
  %v358 = vrot.slane %v183, %v357
  %v359 = vlaneseq
  %v360 = vshrl.u32 %v359, 7
  %v361 = vsub.s32 0, %v360
  %v362 = vrot.slane %v187, %v361
  %v363 = vlaneseq
  %v364 = vshrl.u32 %v363, 7
  %v365 = vsub.s32 0, %v364
  %v366 = vrot.slane %v191, %v365
  %v367 = vlaneseq
  %v368 = vshrl.u32 %v367, 7
  %v369 = vsub.s32 0, %v368
  %v370 = vrot.slane %v195, %v369
  %v371 = vlaneseq
  %v372 = vshrl.u32 %v371, 7
  %v373 = vsub.s32 0, %v372
  %v374 = vrot.slane %v199, %v373
  %v375 = vlaneseq
  %v376 = vshrl.u32 %v375, 7
  %v377 = vsub.s32 0, %v376
  %v378 = vrot.slane %v203, %v377
  %v379 = vlaneseq
  %v380 = vshrl.u32 %v379, 7
  %v381 = vsub.s32 0, %v380
  %v382 = vrot.slane %v207, %v381
  %v383 = vlaneseq
  %v384 = vshrl.u32 %v383, 7
  %v385 = vsub.s32 0, %v384
  %v386 = vrot.slane %v211, %v385
  %v387 = vlaneseq
  %v388 = vshrl.u32 %v387, 7
  %v389 = vsub.s32 0, %v388
  %v390 = vrot.slane %v215, %v389
  %v391 = vlaneseq
  %v392 = vshrl.u32 %v391, 7
  %v393 = vsub.s32 0, %v392
  %v394 = vrot.slane %v219, %v393
  %v395 = vlaneseq
  %v396 = vshrl.u32 %v395, 7
  %v397 = vsub.s32 0, %v396
  %v398 = vrot.slane %v223, %v397
  %v399 = vlaneseq
  %v400 = vshrl.u32 %v399, 7
  %v401 = vsub.s32 0, %v400
  %v402 = vrot.slane %v227, %v401
  %v403 = vlaneseq
  %v404 = vshrl.u32 %v403, 7
  %v405 = vsub.s32 0, %v404
  %v406 = vrot.slane %v231, %v405
  %v407 = vlaneseq
  %v408 = vshrl.u32 %v407, 7
  %v409 = vsub.s32 0, %v408
  %v410 = vrot.slane %v235, %v409
  %v411 = vlaneseq
  %v412 = vshrl.u32 %v411, 7
  %v413 = vsub.s32 0, %v412
  %v414 = vrot.slane %v239, %v413
  %v415 = vlaneseq
  %v416 = vshrl.u32 %v415, 7
  %v417 = vsub.s32 0, %v416
  %v418 = vrot.slane %v243, %v417
  %v419 = vlaneseq
  %v420 = vshrl.u32 %v419, 7
  %v421 = vsub.s32 0, %v420
  %v422 = vrot.slane %v247, %v421
  %v423 = vlaneseq
  %v424 = vshrl.u32 %v423, 7
  %v425 = vsub.s32 0, %v424
  %v426 = vrot.slane %v251, %v425
  %v427 = vmul.f32 %v101, %v290
  %v428 = vmul.f32 %v101, %v294
  %v429 = vmul.f32 %v101, %v298
  %v430 = vmul.f32 %v101, %v302
  %v431 = vmul.f32 %v101, %v306
  %v432 = vmul.f32 %v101, %v310
  %v433 = vmul.f32 %v101, %v314
  %v434 = vmul.f32 %v101, %v318
  %v435 = vmul.f32 %v101, %v322
  %v436 = vmul.f32 %v101, %v326
  %v437 = vmul.f32 %v101, %v330
  %v438 = vmul.f32 %v101, %v334
  %v439 = vmul.f32 %v101, %v338
  %v440 = vmul.f32 %v101, %v342
  %v441 = vmul.f32 %v101, %v346
  %v442 = vmul.f32 %v101, %v350
  %v443 = vmul.f32 %v101, %v354
  %v444 = vmul.f32 %v101, %v358
  %v445 = vmul.f32 %v101, %v362
  %v446 = vmul.f32 %v101, %v366
  %v447 = vmul.f32 %v101, %v370
  %v448 = vmul.f32 %v101, %v374
  %v449 = vmul.f32 %v101, %v378
  %v450 = vmul.f32 %v101, %v382
  %v451 = vmul.f32 %v101, %v386
  %v452 = vmul.f32 %v101, %v390
  %v453 = vmul.f32 %v101, %v394
  %v454 = vmul.f32 %v101, %v398
  %v455 = vmul.f32 %v101, %v402
  %v456 = vmul.f32 %v101, %v406
  %v457 = vmul.f32 %v101, %v410
  %v458 = vmul.f32 %v101, %v414
  %v459 = vmul.f32 %v101, %v418
  %v460 = vmul.f32 %v101, %v422
  %v461 = vmul.f32 %v101, %v426
  %v462 = vadd.f32 %v64, %v427
  %v463 = vadd.f32 %v65, %v428
  %v464 = vadd.f32 %v66, %v429
  %v465 = vadd.f32 %v67, %v430
  %v466 = vadd.f32 %v68, %v431
  %v467 = vadd.f32 %v69, %v432
  %v468 = vadd.f32 %v70, %v433
  %v469 = vadd.f32 %v71, %v434
  %v470 = vadd.f32 %v72, %v435
  %v471 = vadd.f32 %v73, %v436
  %v472 = vadd.f32 %v74, %v437
  %v473 = vadd.f32 %v75, %v438
  %v474 = vadd.f32 %v76, %v439
  %v475 = vadd.f32 %v77, %v440
  %v476 = vadd.f32 %v78, %v441
  %v477 = vadd.f32 %v79, %v442
  %v478 = vadd.f32 %v80, %v443
  %v479 = vadd.f32 %v81, %v444
  %v480 = vadd.f32 %v82, %v445
  %v481 = vadd.f32 %v83, %v446
  %v482 = vadd.f32 %v84, %v447
  %v483 = vadd.f32 %v85, %v448
  %v484 = vadd.f32 %v86, %v449
  %v485 = vadd.f32 %v87, %v450
  %v486 = vadd.f32 %v88, %v451
  %v487 = vadd.f32 %v89, %v452
  %v488 = vadd.f32 %v90, %v453
  %v489 = vadd.f32 %v91, %v454
  %v490 = vadd.f32 %v92, %v455
  %v491 = vadd.f32 %v93, %v456
  %v492 = vadd.f32 %v94, %v457
  %v493 = vadd.f32 %v95, %v458
  %v494 = vadd.f32 %v96, %v459
  %v495 = vadd.f32 %v97, %v460
  %v496 = vadd.f32 %v98, %v461
  %497 = vset.pattern.permute.xlu0 1
  %498 = vperm.xlu0 %497, %v23
  %v499 = vpop.permute.xlu0 %498
  %v501 = vlaneseq
  %v502 = vshrl.u32 %v501, 7
  %v503 = vsub.s32 1, %v502
  %v504 = vrot.slane %v14, %v503
  %v505 = vlaneseq
  %v506 = vshrl.u32 %v505, 7
  %v507 = vsub.s32 3, %v506
  %v508 = vrot.slane %v14, %v507
  %v509 = vlaneseq
  %v510 = vshrl.u32 %v509, 7
  %v511 = vsub.s32 5, %v510
  %v512 = vrot.slane %v14, %v511
  %v513 = vlaneseq
  %v514 = vshrl.u32 %v513, 7
  %v515 = vsub.s32 7, %v514
  %v516 = vrot.slane %v14, %v515
  %v517 = vlaneseq
  %v518 = vshrl.u32 %v517, 7
  %v519 = vsub.s32 1, %v518
  %v520 = vrot.slane %v15, %v519
  %v521 = vlaneseq
  %v522 = vshrl.u32 %v521, 7
  %v523 = vsub.s32 3, %v522
  %v524 = vrot.slane %v15, %v523
  %v525 = vlaneseq
  %v526 = vshrl.u32 %v525, 7
  %v527 = vsub.s32 5, %v526
  %v528 = vrot.slane %v15, %v527
  %v529 = vlaneseq
  %v530 = vshrl.u32 %v529, 7
  %v531 = vsub.s32 7, %v530
  %v532 = vrot.slane %v15, %v531
  %v533 = vlaneseq
  %v534 = vshrl.u32 %v533, 7
  %v535 = vsub.s32 1, %v534
  %v536 = vrot.slane %v16, %v535
  %v537 = vlaneseq
  %v538 = vshrl.u32 %v537, 7
  %v539 = vsub.s32 3, %v538
  %v540 = vrot.slane %v16, %v539
  %v541 = vlaneseq
  %v542 = vshrl.u32 %v541, 7
  %v543 = vsub.s32 5, %v542
  %v544 = vrot.slane %v16, %v543
  %v545 = vlaneseq
  %v546 = vshrl.u32 %v545, 7
  %v547 = vsub.s32 7, %v546
  %v548 = vrot.slane %v16, %v547
  %v549 = vlaneseq
  %v550 = vshrl.u32 %v549, 7
  %v551 = vsub.s32 1, %v550
  %v552 = vrot.slane %v17, %v551
  %v553 = vlaneseq
  %v554 = vshrl.u32 %v553, 7
  %v555 = vsub.s32 3, %v554
  %v556 = vrot.slane %v17, %v555
  %v557 = vlaneseq
  %v558 = vshrl.u32 %v557, 7
  %v559 = vsub.s32 5, %v558
  %v560 = vrot.slane %v17, %v559
  %v561 = vlaneseq
  %v562 = vshrl.u32 %v561, 7
  %v563 = vsub.s32 7, %v562
  %v564 = vrot.slane %v17, %v563
  %v565 = vlaneseq
  %v566 = vshrl.u32 %v565, 7
  %v567 = vsub.s32 1, %v566
  %v568 = vrot.slane %v18, %v567
  %v569 = vlaneseq
  %v570 = vshrl.u32 %v569, 7
  %v571 = vsub.s32 3, %v570
  %v572 = vrot.slane %v18, %v571
  %v573 = vlaneseq
  %v574 = vshrl.u32 %v573, 7
  %v575 = vsub.s32 5, %v574
  %v576 = vrot.slane %v18, %v575
  %v577 = vlaneseq
  %v578 = vshrl.u32 %v577, 7
  %v579 = vsub.s32 7, %v578
  %v580 = vrot.slane %v18, %v579
  %v581 = vlaneseq
  %v582 = vshrl.u32 %v581, 7
  %v583 = vsub.s32 1, %v582
  %v584 = vrot.slane %v19, %v583
  %v585 = vlaneseq
  %v586 = vshrl.u32 %v585, 7
  %v587 = vsub.s32 3, %v586
  %v588 = vrot.slane %v19, %v587
  %v589 = vlaneseq
  %v590 = vshrl.u32 %v589, 7
  %v591 = vsub.s32 5, %v590
  %v592 = vrot.slane %v19, %v591
  %v593 = vlaneseq
  %v594 = vshrl.u32 %v593, 7
  %v595 = vsub.s32 7, %v594
  %v596 = vrot.slane %v19, %v595
  %v597 = vlaneseq
  %v598 = vshrl.u32 %v597, 7
  %v599 = vsub.s32 1, %v598
  %v600 = vrot.slane %v20, %v599
  %v601 = vlaneseq
  %v602 = vshrl.u32 %v601, 7
  %v603 = vsub.s32 3, %v602
  %v604 = vrot.slane %v20, %v603
  %v605 = vlaneseq
  %v606 = vshrl.u32 %v605, 7
  %v607 = vsub.s32 5, %v606
  %v608 = vrot.slane %v20, %v607
  %v609 = vlaneseq
  %v610 = vshrl.u32 %v609, 7
  %v611 = vsub.s32 7, %v610
  %v612 = vrot.slane %v20, %v611
  %v613 = vlaneseq
  %v614 = vshrl.u32 %v613, 7
  %v615 = vsub.s32 1, %v614
  %v616 = vrot.slane %v21, %v615
  %v617 = vlaneseq
  %v618 = vshrl.u32 %v617, 7
  %v619 = vsub.s32 3, %v618
  %v620 = vrot.slane %v21, %v619
  %v621 = vlaneseq
  %v622 = vshrl.u32 %v621, 7
  %v623 = vsub.s32 5, %v622
  %v624 = vrot.slane %v21, %v623
  %v625 = vlaneseq
  %v626 = vshrl.u32 %v625, 7
  %v627 = vsub.s32 7, %v626
  %v628 = vrot.slane %v21, %v627
  %v629 = vlaneseq
  %v630 = vshrl.u32 %v629, 7
  %v631 = vsub.s32 1, %v630
  %v632 = vrot.slane %v22, %v631
  %v633 = vlaneseq
  %v634 = vshrl.u32 %v633, 7
  %v635 = vsub.s32 3, %v634
  %v636 = vrot.slane %v22, %v635
  %v637 = vlaneseq
  %v638 = vshrl.u32 %v637, 7
  %v639 = vsub.s32 5, %v638
  %v640 = vrot.slane %v22, %v639
  %v676 = vlaneseq
  %v677 = vshrl.u32 %v676, 7
  %v678 = vsub.s32 1, %v677
  %v679 = vrot.slane %v504, %v678
  %v680 = vlaneseq
  %v681 = vshrl.u32 %v680, 7
  %v682 = vsub.s32 1, %v681
  %v683 = vrot.slane %v508, %v682
  %v684 = vlaneseq
  %v685 = vshrl.u32 %v684, 7
  %v686 = vsub.s32 1, %v685
  %v687 = vrot.slane %v512, %v686
  %v688 = vlaneseq
  %v689 = vshrl.u32 %v688, 7
  %v690 = vsub.s32 1, %v689
  %v691 = vrot.slane %v516, %v690
  %v692 = vlaneseq
  %v693 = vshrl.u32 %v692, 7
  %v694 = vsub.s32 1, %v693
  %v695 = vrot.slane %v520, %v694
  %v696 = vlaneseq
  %v697 = vshrl.u32 %v696, 7
  %v698 = vsub.s32 1, %v697
  %v699 = vrot.slane %v524, %v698
  %v700 = vlaneseq
  %v701 = vshrl.u32 %v700, 7
  %v702 = vsub.s32 1, %v701
  %v703 = vrot.slane %v528, %v702
  %v704 = vlaneseq
  %v705 = vshrl.u32 %v704, 7
  %v706 = vsub.s32 1, %v705
  %v707 = vrot.slane %v532, %v706
  %v708 = vlaneseq
  %v709 = vshrl.u32 %v708, 7
  %v710 = vsub.s32 1, %v709
  %v711 = vrot.slane %v536, %v710
  %v712 = vlaneseq
  %v713 = vshrl.u32 %v712, 7
  %v714 = vsub.s32 1, %v713
  %v715 = vrot.slane %v540, %v714
  %v716 = vlaneseq
  %v717 = vshrl.u32 %v716, 7
  %v718 = vsub.s32 1, %v717
  %v719 = vrot.slane %v544, %v718
  %v720 = vlaneseq
  %v721 = vshrl.u32 %v720, 7
  %v722 = vsub.s32 1, %v721
  %v723 = vrot.slane %v548, %v722
  %v724 = vlaneseq
  %v725 = vshrl.u32 %v724, 7
  %v726 = vsub.s32 1, %v725
  %v727 = vrot.slane %v552, %v726
  %v728 = vlaneseq
  %v729 = vshrl.u32 %v728, 7
  %v730 = vsub.s32 1, %v729
  %v731 = vrot.slane %v556, %v730
  %v732 = vlaneseq
  %v733 = vshrl.u32 %v732, 7
  %v734 = vsub.s32 1, %v733
  %v735 = vrot.slane %v560, %v734
  %v736 = vlaneseq
  %v737 = vshrl.u32 %v736, 7
  %v738 = vsub.s32 1, %v737
  %v739 = vrot.slane %v564, %v738
  %v740 = vlaneseq
  %v741 = vshrl.u32 %v740, 7
  %v742 = vsub.s32 1, %v741
  %v743 = vrot.slane %v568, %v742
  %v744 = vlaneseq
  %v745 = vshrl.u32 %v744, 7
  %v746 = vsub.s32 1, %v745
  %v747 = vrot.slane %v572, %v746
  %v748 = vlaneseq
  %v749 = vshrl.u32 %v748, 7
  %v750 = vsub.s32 1, %v749
  %v751 = vrot.slane %v576, %v750
  %v752 = vlaneseq
  %v753 = vshrl.u32 %v752, 7
  %v754 = vsub.s32 1, %v753
  %v755 = vrot.slane %v580, %v754
  %v756 = vlaneseq
  %v757 = vshrl.u32 %v756, 7
  %v758 = vsub.s32 1, %v757
  %v759 = vrot.slane %v584, %v758
  %v760 = vlaneseq
  %v761 = vshrl.u32 %v760, 7
  %v762 = vsub.s32 1, %v761
  %v763 = vrot.slane %v588, %v762
  %v764 = vlaneseq
  %v765 = vshrl.u32 %v764, 7
  %v766 = vsub.s32 1, %v765
  %v767 = vrot.slane %v592, %v766
  %v768 = vlaneseq
  %v769 = vshrl.u32 %v768, 7
  %v770 = vsub.s32 1, %v769
  %v771 = vrot.slane %v596, %v770
  %v772 = vlaneseq
  %v773 = vshrl.u32 %v772, 7
  %v774 = vsub.s32 1, %v773
  %v775 = vrot.slane %v600, %v774
  %v776 = vlaneseq
  %v777 = vshrl.u32 %v776, 7
  %v778 = vsub.s32 1, %v777
  %v779 = vrot.slane %v604, %v778
  %v780 = vlaneseq
  %v781 = vshrl.u32 %v780, 7
  %v782 = vsub.s32 1, %v781
  %v783 = vrot.slane %v608, %v782
  %v784 = vlaneseq
  %v785 = vshrl.u32 %v784, 7
  %v786 = vsub.s32 1, %v785
  %v787 = vrot.slane %v612, %v786
  %v788 = vlaneseq
  %v789 = vshrl.u32 %v788, 7
  %v790 = vsub.s32 1, %v789
  %v791 = vrot.slane %v616, %v790
  %v792 = vlaneseq
  %v793 = vshrl.u32 %v792, 7
  %v794 = vsub.s32 1, %v793
  %v795 = vrot.slane %v620, %v794
  %v796 = vlaneseq
  %v797 = vshrl.u32 %v796, 7
  %v798 = vsub.s32 1, %v797
  %v799 = vrot.slane %v624, %v798
  %v800 = vlaneseq
  %v801 = vshrl.u32 %v800, 7
  %v802 = vsub.s32 1, %v801
  %v803 = vrot.slane %v628, %v802
  %v804 = vlaneseq
  %v805 = vshrl.u32 %v804, 7
  %v806 = vsub.s32 1, %v805
  %v807 = vrot.slane %v632, %v806
  %v808 = vlaneseq
  %v809 = vshrl.u32 %v808, 7
  %v810 = vsub.s32 1, %v809
  %v811 = vrot.slane %v636, %v810
  %v812 = vlaneseq
  %v813 = vshrl.u32 %v812, 7
  %v814 = vsub.s32 1, %v813
  %v815 = vrot.slane %v640, %v814
  %v816 = vmul.f32 %v499, %v679
  %v817 = vmul.f32 %v499, %v683
  %v818 = vmul.f32 %v499, %v687
  %v819 = vmul.f32 %v499, %v691
  %v820 = vmul.f32 %v499, %v695
  %v821 = vmul.f32 %v499, %v699
  %v822 = vmul.f32 %v499, %v703
  %v823 = vmul.f32 %v499, %v707
  %v824 = vmul.f32 %v499, %v711
  %v825 = vmul.f32 %v499, %v715
  %v826 = vmul.f32 %v499, %v719
  %v827 = vmul.f32 %v499, %v723
  %v828 = vmul.f32 %v499, %v727
  %v829 = vmul.f32 %v499, %v731
  %v830 = vmul.f32 %v499, %v735
  %v831 = vmul.f32 %v499, %v739
  %v832 = vmul.f32 %v499, %v743
  %v833 = vmul.f32 %v499, %v747
  %v834 = vmul.f32 %v499, %v751
  %v835 = vmul.f32 %v499, %v755
  %v836 = vmul.f32 %v499, %v759
  %v837 = vmul.f32 %v499, %v763
  %v838 = vmul.f32 %v499, %v767
  %v839 = vmul.f32 %v499, %v771
  %v840 = vmul.f32 %v499, %v775
  %v841 = vmul.f32 %v499, %v779
  %v842 = vmul.f32 %v499, %v783
  %v843 = vmul.f32 %v499, %v787
  %v844 = vmul.f32 %v499, %v791
  %v845 = vmul.f32 %v499, %v795
  %v846 = vmul.f32 %v499, %v799
  %v847 = vmul.f32 %v499, %v803
  %v848 = vmul.f32 %v499, %v807
  %v849 = vmul.f32 %v499, %v811
  %v850 = vmul.f32 %v499, %v815
  %v851 = vadd.f32 %v462, %v816
  %v852 = vadd.f32 %v463, %v817
  %v853 = vadd.f32 %v464, %v818
  %v854 = vadd.f32 %v465, %v819
  %v855 = vadd.f32 %v466, %v820
  %v856 = vadd.f32 %v467, %v821
  %v857 = vadd.f32 %v468, %v822
  %v858 = vadd.f32 %v469, %v823
  %v859 = vadd.f32 %v470, %v824
  %v860 = vadd.f32 %v471, %v825
  %v861 = vadd.f32 %v472, %v826
  %v862 = vadd.f32 %v473, %v827
  %v863 = vadd.f32 %v474, %v828
  %v864 = vadd.f32 %v475, %v829
  %v865 = vadd.f32 %v476, %v830
  %v866 = vadd.f32 %v477, %v831
  %v867 = vadd.f32 %v478, %v832
  %v868 = vadd.f32 %v479, %v833
  %v869 = vadd.f32 %v480, %v834
  %v870 = vadd.f32 %v481, %v835
  %v871 = vadd.f32 %v482, %v836
  %v872 = vadd.f32 %v483, %v837
  %v873 = vadd.f32 %v484, %v838
  %v874 = vadd.f32 %v485, %v839
  %v875 = vadd.f32 %v486, %v840
  %v876 = vadd.f32 %v487, %v841
  %v877 = vadd.f32 %v488, %v842
  %v878 = vadd.f32 %v489, %v843
  %v879 = vadd.f32 %v490, %v844
  %v880 = vadd.f32 %v491, %v845
  %v881 = vadd.f32 %v492, %v846
  %v882 = vadd.f32 %v493, %v847
  %v883 = vadd.f32 %v494, %v848
  %v884 = vadd.f32 %v495, %v849
  %v885 = vadd.f32 %v496, %v850
  %886 = vst [vmem:[%s3] sm:$0x3f] %v851
  %887 = vst [vmem:[%s3 + $0x8] sm:$0x3f] %v852
  %888 = vst [vmem:[%s3 + $0x10] sm:$0x3f] %v853
  %889 = vst [vmem:[%s3 + $0x18] sm:$0x3f] %v854
  %890 = vst [vmem:[%s3 + $0x20] sm:$0x3f] %v855
  %891 = vst [vmem:[%s3 + $0x28] sm:$0x3f] %v856
  %892 = vst [vmem:[%s3 + $0x30] sm:$0x3f] %v857
  %893 = vst [vmem:[%s3 + $0x38] sm:$0x3f] %v858
  %894 = vst [vmem:[%s3 + $0x40] sm:$0x3f] %v859
  %895 = vst [vmem:[%s3 + $0x48] sm:$0x3f] %v860
  %896 = vst [vmem:[%s3 + $0x50] sm:$0x3f] %v861
  %897 = vst [vmem:[%s3 + $0x58] sm:$0x3f] %v862
  %898 = vst [vmem:[%s3 + $0x60] sm:$0x3f] %v863
  %899 = vst [vmem:[%s3 + $0x68] sm:$0x3f] %v864
  %900 = vst [vmem:[%s3 + $0x70] sm:$0x3f] %v865
  %901 = vst [vmem:[%s3 + $0x78] sm:$0x3f] %v866
  %902 = vst [vmem:[%s3 + $0x80] sm:$0x3f] %v867
  %903 = vst [vmem:[%s3 + $0x88] sm:$0x3f] %v868
  %904 = vst [vmem:[%s3 + $0x90] sm:$0x3f] %v869
  %905 = vst [vmem:[%s3 + $0x98] sm:$0x3f] %v870
  %906 = vst [vmem:[%s3 + $0xa0] sm:$0x3f] %v871
  %907 = vst [vmem:[%s3 + $0xa8] sm:$0x3f] %v872
  %908 = vst [vmem:[%s3 + $0xb0] sm:$0x3f] %v873
  %909 = vst [vmem:[%s3 + $0xb8] sm:$0x3f] %v874
  %910 = vst [vmem:[%s3 + $0xc0] sm:$0x3f] %v875
  %911 = vst [vmem:[%s3 + $0xc8] sm:$0x3f] %v876
  %912 = vst [vmem:[%s3 + $0xd0] sm:$0x3f] %v877
  %913 = vst [vmem:[%s3 + $0xd8] sm:$0x3f] %v878
  %914 = vst [vmem:[%s3 + $0xe0] sm:$0x3f] %v879
  %915 = vst [vmem:[%s3 + $0xe8] sm:$0x3f] %v880
  %916 = vst [vmem:[%s3 + $0xf0] sm:$0x3f] %v881
  %917 = vst [vmem:[%s3 + $0xf8] sm:$0x3f] %v882
  %918 = vst [vmem:[%s3 + $0x100] sm:$0x3f] %v883
  %919 = vst [vmem:[%s3 + $0x108] sm:$0x3f] %v884
  %920 = vst [vmem:[%s3 + $0x110] sm:$0x3f] %v885
  // Predicated region
  $region14: #{tpu_custom_call.1} parent=0 // pred_check
    _
  $region15: #{tpu_custom_call.1} parent=0 // pred_check_branch
    %922 = sbr.rel (0) target = $region17
  $region16: #{tpu_custom_call.1} parent=0 // pred_region
    _
  $region17: #{tpu_custom_call.1} parent=0 // pred_fallthru
    _
  // Predicated region
  $region18: #{tpu_custom_call.1} parent=0 // pred_check
    _
  $region19: #{tpu_custom_call.1} parent=0 // pred_check_branch
    %924 = sbr.rel (0) target = $region21
  $region20: #{tpu_custom_call.1} parent=0 // pred_region
    _
  $region21: #{tpu_custom_call.1} parent=0 // pred_fallthru
    _

</llo_original>
